<compile_context>
chip_gen: v7x
topology: tpu7x:2x2x1
jax: 0.10.0
libtpu: 0.0.40
codegen_flags: <defaults>
</compile_context>

<pallas_src>
import functools

import jax
import jax.numpy as jnp
from jax import lax
from jax.experimental import pallas as pl
from jax.experimental.pallas import tpu as pltpu

L1_NORM_EPS = 1e-12            # F.normalize(p=1) default eps
BLOCK_BYTES_TARGET = 1 << 20   # ~1 MiB per input block (f32 math) -> ~85%+ HBM roofline


def _cdiv(a, b):
    return -(-a // b)


def _proportion_loss_kernel(x_ref, t_ref, soft_ref, counts_ref, tsum_ref, *,
                            b_actual, first_masked_tile, needs_mask, rows_blocked):
    """One batch tile.

    x_ref/t_ref: (C, TB) lane-dense tile (or (TB, C) row tile when rows_blocked).
    soft_ref:   (1, 1, 1) per-chunk soft-loss sum accumulator (output-resident).
    counts_ref: (1, C, 1) per-chunk argmax-count accumulator.
    tsum_ref:   (1, C, 1) per-chunk target-sum accumulator.
    """
    p = pl.program_id(0)          # chunk (parallel: split across v7x TensorCores)
    k = pl.program_id(1)          # batch-tile within chunk (arbitrary: reduction)
    ntpc = pl.num_programs(1)

    @pl.when(k == 0)
    def _init():
        soft_ref[...] = jnp.zeros_like(soft_ref)
        counts_ref[...] = jnp.zeros_like(counts_ref)
        tsum_ref[...] = jnp.zeros_like(tsum_ref)

    x = x_ref[...].astype(jnp.float32)
    t = t_ref[...].astype(jnp.float32)
    if rows_blocked:
        # [TB, C] row tile -> [C, TB]: lane<->sublane relayout on the idle XLU,
        # instead of a separate HBM-materialized transpose in the wrapper.
        x = jnp.transpose(x)
        t = jnp.transpose(t)
    c, tb = x.shape               # classes on sublanes, samples on lanes

    # ---- soft-loss partials: fused log-softmax algebra (no [C,TB] logsm temp) ----
    x_max = jnp.max(x, axis=0, keepdims=True)                           # [1, TB]
    shifted = x - x_max                                                 # [C, TB]
    log_sumexp = jnp.log(jnp.sum(jnp.exp(shifted), axis=0, keepdims=True))
    t_sum = jnp.sum(t, axis=0, keepdims=True)                           # signed sum
    t_l1 = jnp.sum(jnp.abs(t), axis=0, keepdims=True)                   # F.normalize norm
    inv_l1 = pl.reciprocal(jnp.maximum(t_l1, L1_NORM_EPS), approx=False)
    # -sum_c(t_norm * log_softmax) == (log_sumexp*sum_c(t) - sum_c(t*shifted)) / ||t||_1
    soft_rows = (log_sumexp * t_sum
                 - jnp.sum(t * shifted, axis=0, keepdims=True)) * inv_l1  # [1, TB]

    # ---- hard-loss partials: argmax one-hot (first-index tie-break, like argmax) ----
    class_ids = lax.broadcasted_iota(jnp.int32, (c, tb), 0)
    argmax_cls = jnp.min(jnp.where(x == x_max, class_ids, c), axis=0, keepdims=True)
    onehot = (class_ids == argmax_cls).astype(jnp.float32)              # [C, TB]

    def _accumulate(sr, oh, tv):
        soft_ref[...] += jnp.sum(sr, axis=1, keepdims=True)[None]       # [1,1,1]
        counts_ref[...] += jnp.sum(oh, axis=1, keepdims=True)[None]     # [1,C,1]
        tsum_ref[...] += jnp.sum(tv, axis=1, keepdims=True)[None]       # [1,C,1]

    if needs_mask:
        g = p * ntpc + k          # global (unclamped) tile index

        @pl.when(g < first_masked_tile)
        def _acc_full():          # interior tiles: no masking passes
            _accumulate(soft_rows, onehot, t)

        @pl.when(g >= first_masked_tile)
        def _acc_edge():          # ragged / fully-OOB tiles: select-mask garbage lanes
            lane = lax.broadcasted_iota(jnp.int32, (1, tb), 1) + g * tb
            valid = lane < b_actual
            _accumulate(jnp.where(valid, soft_rows, 0.0),
                        jnp.where(valid, onehot, 0.0),
                        jnp.where(valid, t, 0.0))
    else:
        _accumulate(soft_rows, onehot, t)


def proportion_loss(inputs, targets, num_classes, *, mode="combined", alpha=0.5,
                    epsilon=1e-7, classes_first=False, lane_tile=None):
    """ProportionLoss forward. inputs/targets are [B, C] (or [C, B] if classes_first)."""
    assert mode in ("combined", "soft", "hard")
    assert inputs.shape == targets.shape and inputs.ndim == 2

    if classes_first:
        c, b = inputs.shape
        rows_blocked = False
        x_in, t_in = inputs, targets                    # zero-copy fast path
    else:
        b, c = inputs.shape
        if c % 128 == 0:
            rows_blocked = True                         # in-kernel XLU relayout
            x_in, t_in = inputs, targets
        else:
            # TODO(synk): for small C the producer should emit [C, B] (classes_first=True)
            # to avoid this extra HBM read+write pass; natural [B,C] tiles would leave
            # 128-C lanes idle per vreg, which is worse than the transpose for tiny C.
            rows_blocked = False
            x_in, t_in = jnp.transpose(inputs), jnp.transpose(targets)
    assert c == num_classes

    # ---- lane-tile from a VMEM byte budget (feedback #5); f32-math conservative ----
    if lane_tile is not None:
        assert lane_tile >= b or lane_tile % 128 == 0
        tb = lane_tile
    else:
        tb = max(128, (BLOCK_BYTES_TARGET // (4 * c)) // 128 * 128)
    tb = min(tb, b)                                     # single full-extent tile if small
    nt = _cdiv(b, tb)                                   # real batch tiles (no padding)
    num_chunks = 2 if nt >= 2 else 1                    # v7x megacore split; loop on 1-TC
    ntpc = _cdiv(nt, num_chunks)                        # tiles per chunk (rect. grid)
    first_masked = nt - 1 if (b % tb) else nt           # first tile needing the lane mask
    needs_mask = first_masked < num_chunks * ntpc

    def _in_map(p, k):
        g = jnp.minimum(p * ntpc + k, nt - 1)           # clamp fully-OOB tiles (masked)
        return (g, 0) if rows_blocked else (0, g)

    in_block = (tb, c) if rows_blocked else (c, tb)
    in_spec = pl.BlockSpec(in_block, _in_map)

    out_shape = (jax.ShapeDtypeStruct((num_chunks, 1, 1), jnp.float32),
                 jax.ShapeDtypeStruct((num_chunks, c, 1), jnp.float32),
                 jax.ShapeDtypeStruct((num_chunks, c, 1), jnp.float32))
    out_specs = (pl.BlockSpec((1, 1, 1), lambda p, k: (p, 0, 0)),
                 pl.BlockSpec((1, c, 1), lambda p, k: (p, 0, 0)),
                 pl.BlockSpec((1, c, 1), lambda p, k: (p, 0, 0)))

    kernel = functools.partial(_proportion_loss_kernel,
                               b_actual=b,
                               first_masked_tile=first_masked,
                               needs_mask=needs_mask,
                               rows_blocked=rows_blocked)

    soft_part, counts_part, tsum_part = pl.pallas_call(
        kernel,
        out_shape=out_shape,
        grid_spec=pltpu.PrefetchScalarGridSpec(
            num_scalar_prefetch=0,
            grid=(num_chunks, ntpc),
            in_specs=[in_spec, in_spec],
            out_specs=out_specs),
        compiler_params=pltpu.CompilerParams(
            dimension_semantics=("parallel", "arbitrary")),
    )(x_in, t_in)

    # ---- tiny finalize in plain JAX: combine per-chunk partials, KL, alpha-mix ----
    soft = jnp.sum(soft_part) / b                       # mean per-sample soft loss
    counts = jnp.sum(counts_part[:, :, 0], axis=0)      # [C] argmax bincount
    tsum = jnp.sum(tsum_part[:, :, 0], axis=0)          # [C] sum of targets
    predicted = counts / (jnp.sum(counts) + epsilon)
    target_dist = tsum / b
    hard = jnp.sum(target_dist * jnp.log((target_dist + epsilon) / (predicted + epsilon)))

    metrics = {}
    if mode in ("soft", "combined"):
        metrics["loss_soft"] = soft
    if mode in ("hard", "combined"):
        metrics["loss_hard"] = hard
    if mode == "combined":
        total = alpha * soft + (1.0 - alpha) * hard
        metrics["loss_total"] = total
    elif mode == "soft":
        total = soft
    else:
        total = hard
    # TODO(synk): PyTorch stores .item() host scalars in metrics; returned as JAX scalars.
    return total, metrics


def _reference(inputs, targets, num_classes, alpha=0.5, epsilon=1e-7):
    """Pure-JAX mirror of the PyTorch forward (mode='combined')."""
    x = inputs.astype(jnp.float32)
    t = targets.astype(jnp.float32)
    sm = jax.nn.softmax(x, axis=-1)
    t_norm = t / jnp.maximum(jnp.sum(jnp.abs(t), axis=-1, keepdims=True), L1_NORM_EPS)
    soft = jnp.mean(-jnp.sum(t_norm * jnp.log(sm + epsilon), axis=-1))
    amax = jnp.argmax(x, axis=1)
    counts = jnp.sum(jax.nn.one_hot(amax, num_classes, dtype=jnp.float32), axis=0)
    predicted = counts / (jnp.sum(counts) + epsilon)
    target_dist = jnp.mean(t, axis=0)
    hard = jnp.sum(target_dist * jnp.log((target_dist + epsilon) / (predicted + epsilon)))
    return alpha * soft + (1.0 - alpha) * hard, soft, hard


if __name__ == "__main__":
    key = jax.random.PRNGKey(0)

    def _check(b, c, *, lane_tile=None, dtype=jnp.float32, classes_first=False):
        k1, k2 = jax.random.split(jax.random.fold_in(key, b * 131 + c))
        x = jax.random.normal(k1, (b, c), jnp.float32)        # logits
        t = jax.random.uniform(k2, (b, c), jnp.float32)       # proportions (>= 0)
        x_in = x.astype(dtype)
        t_in = t.astype(dtype)
        # Reference evaluated on the same (dtype-rounded) values, in f32.
        xr = x_in.astype(jnp.float32)
        tr = t_in.astype(jnp.float32)
        if classes_first:
            x_in = jnp.transpose(x_in)
            t_in = jnp.transpose(t_in)

        total, metrics = proportion_loss(x_in, t_in, c, lane_tile=lane_tile,
                                         classes_first=classes_first)
        total = jax.block_until_ready(total)

        ref_total, ref_soft, ref_hard = _reference(xr, tr, c)
        # exact log-softmax vs log(softmax + 1e-7) in the reference -> loosened atol.
        atol, rtol = 1e-4, 1e-5
        assert jnp.allclose(total, ref_total, atol=atol, rtol=rtol), (total, ref_total)
        assert jnp.allclose(metrics["loss_soft"], ref_soft, atol=atol, rtol=rtol)
        assert jnp.allclose(metrics["loss_hard"], ref_hard, atol=atol, rtol=rtol)

    # Single-tile small shape matching the module's [batch, num_classes] contract.
    _check(8, 8)
    # Tiled + ragged tail + uneven 2-chunk split (tiles: 0,1 | 2(ragged),3(OOB,masked)).
    _check(300, 16, lane_tile=128)
    # Producer-supplied [C, B] layout: zero-copy path, no wrapper transpose.
    _check(300, 16, lane_tile=128, classes_first=True)
    # C % 128 == 0: original [B, C] kept, in-kernel XLU relayout, ragged tail.
    _check(272, 128, lane_tile=128)
    # bf16 passthrough (kernel upcasts to f32 on load).
    _check(96, 16, dtype=jnp.bfloat16)

    print("KERNEL_OK")
</pallas_src>

<mosaic_0001>
module attributes {stable_mosaic.version = 11 : i64} {
  func.func @_proportion_loss_kernel(%arg0: i32, %arg1: i32, %arg2: memref<8x8xf32, #tpu.memory_space<vmem>>, %arg3: memref<8x8xf32, #tpu.memory_space<vmem>>, %arg4: memref<1x1x1xf32, #tpu.memory_space<vmem>>, %arg5: memref<1x8x1xf32, #tpu.memory_space<vmem>>, %arg6: memref<1x8x1xf32, #tpu.memory_space<vmem>>) attributes {dimension_semantics = [#tpu.dimension_semantics<parallel>, #tpu.dimension_semantics<arbitrary>], iteration_bounds = array<i64: 1, 1>, scalar_prefetch = 0 : i64, scratch_operands = 0 : i64, tpu.core_type = #tpu.core_type<tc>, window_params = [{transform_indices = @transform_0, window_bounds = array<i64: 8, 8>}, {transform_indices = @transform_1, window_bounds = array<i64: 8, 8>}, {transform_indices = @transform_2, window_bounds = array<i64: 1, 1, 1>}, {transform_indices = @transform_3, window_bounds = array<i64: 1, 8, 1>}, {transform_indices = @transform_4, window_bounds = array<i64: 1, 8, 1>}]} {
    %c0_i32 = arith.constant 0 : i32
    %0 = arith.cmpi eq, %arg1, %c0_i32 : i32
    %1 = arith.extui %0 : i1 to i32
    %c0_i32_0 = arith.constant 0 : i32
    %2 = arith.cmpi ne, %1, %c0_i32_0 : i32
    scf.if %2 {
      %cst_31 = arith.constant 0.000000e+00 : f32
      %56 = vector.broadcast %cst_31 : f32 to vector<1x1x1xf32>
      %c0_32 = arith.constant 0 : index
      %c0_33 = arith.constant 0 : index
      %c0_34 = arith.constant 0 : index
      %57 = vector.load %arg4[%c0_32, %c0_33, %c0_34] : memref<1x1x1xf32, #tpu.memory_space<vmem>>, vector<1x1x1xf32>
      tpu.vector_store %arg4[%c0_32, %c0_33, %c0_34], %56 {strides = array<i32>} : memref<1x1x1xf32, #tpu.memory_space<vmem>>, vector<1x1x1xf32>,
      %cst_35 = arith.constant 0.000000e+00 : f32
      %58 = vector.broadcast %cst_35 : f32 to vector<1x8x1xf32>
      %c0_36 = arith.constant 0 : index
      %c0_37 = arith.constant 0 : index
      %c0_38 = arith.constant 0 : index
      %59 = vector.load %arg5[%c0_36, %c0_37, %c0_38] : memref<1x8x1xf32, #tpu.memory_space<vmem>>, vector<1x8x1xf32>
      tpu.vector_store %arg5[%c0_36, %c0_37, %c0_38], %58 {strides = array<i32>} : memref<1x8x1xf32, #tpu.memory_space<vmem>>, vector<1x8x1xf32>,
      %cst_39 = arith.constant 0.000000e+00 : f32
      %60 = vector.broadcast %cst_39 : f32 to vector<1x8x1xf32>
      %c0_40 = arith.constant 0 : index
      %c0_41 = arith.constant 0 : index
      %c0_42 = arith.constant 0 : index
      %61 = vector.load %arg6[%c0_40, %c0_41, %c0_42] : memref<1x8x1xf32, #tpu.memory_space<vmem>>, vector<1x8x1xf32>
      tpu.vector_store %arg6[%c0_40, %c0_41, %c0_42], %60 {strides = array<i32>} : memref<1x8x1xf32, #tpu.memory_space<vmem>>, vector<1x8x1xf32>,
    } else {
    }
    %c0 = arith.constant 0 : index
    %c0_1 = arith.constant 0 : index
    %3 = vector.load %arg2[%c0, %c0_1] : memref<8x8xf32, #tpu.memory_space<vmem>>, vector<8x8xf32>
    %c0_2 = arith.constant 0 : index
    %c0_3 = arith.constant 0 : index
    %4 = vector.load %arg3[%c0_2, %c0_3] : memref<8x8xf32, #tpu.memory_space<vmem>>, vector<8x8xf32>
    %cst = arith.constant dense<0xFF800000> : vector<8xf32>
    %5 = vector.multi_reduction <maximumf>, %3, %cst [0] : vector<8x8xf32> to vector<8xf32>
    %6 = vector.shape_cast %5 : vector<8xf32> to vector<1x8xf32>
    %7 = vector.broadcast %6 : vector<1x8xf32> to vector<8x8xf32>
    %8 = arith.subf %3, %7 : vector<8x8xf32>
    %9 = math.exp %8 : vector<8x8xf32>
    %cst_4 = arith.constant dense<0.000000e+00> : vector<8xf32>
    %10 = vector.multi_reduction <add>, %9, %cst_4 [0] : vector<8x8xf32> to vector<8xf32>
    %11 = vector.shape_cast %10 : vector<8xf32> to vector<1x8xf32>
    %12 = math.log %11 : vector<1x8xf32>
    %cst_5 = arith.constant dense<0.000000e+00> : vector<8xf32>
    %13 = vector.multi_reduction <add>, %4, %cst_5 [0] : vector<8x8xf32> to vector<8xf32>
    %14 = vector.shape_cast %13 : vector<8xf32> to vector<1x8xf32>
    %15 = math.absf %4 : vector<8x8xf32>
    %cst_6 = arith.constant dense<0.000000e+00> : vector<8xf32>
    %16 = vector.multi_reduction <add>, %15, %cst_6 [0] : vector<8x8xf32> to vector<8xf32>
    %17 = vector.shape_cast %16 : vector<8xf32> to vector<1x8xf32>
    %cst_7 = arith.constant 9.99999996E-13 : f32
    %18 = vector.broadcast %cst_7 : f32 to vector<1x8xf32>
    %19 = arith.maximumf %17, %18 : vector<1x8xf32>
    %20 = tpu.reciprocal %19 : vector<1x8xf32> -> vector<1x8xf32>
    %21 = arith.mulf %12, %14 : vector<1x8xf32>
    %22 = arith.mulf %4, %8 : vector<8x8xf32>
    %cst_8 = arith.constant dense<0.000000e+00> : vector<8xf32>
    %23 = vector.multi_reduction <add>, %22, %cst_8 [0] : vector<8x8xf32> to vector<8xf32>
    %24 = vector.shape_cast %23 : vector<8xf32> to vector<1x8xf32>
    %25 = arith.subf %21, %24 : vector<1x8xf32>
    %26 = arith.mulf %25, %20 : vector<1x8xf32>
    %27 = tpu.iota {dimensions = array<i32: 0>} : vector<8x8xi32>
    %28 = vector.broadcast %6 : vector<1x8xf32> to vector<8x8xf32>
    %29 = arith.cmpf oeq, %3, %28 : vector<8x8xf32>
    %c8_i32 = arith.constant 8 : i32
    %30 = vector.broadcast %c8_i32 : i32 to vector<8x8xi32>
    %31 = arith.select %29, %27, %30 : vector<8x8xi1>, vector<8x8xi32>
    %cst_9 = arith.constant dense<2147483647> : vector<8xi32>
    %32 = vector.multi_reduction <minsi>, %31, %cst_9 [0] : vector<8x8xi32> to vector<8xi32>
    %33 = vector.shape_cast %32 : vector<8xi32> to vector<1x8xi32>
    %34 = vector.broadcast %33 : vector<1x8xi32> to vector<8x8xi32>
    %35 = arith.cmpi eq, %27, %34 : vector<8x8xi32>
    %36 = arith.extui %35 : vector<8x8xi1> to vector<8x8xi32>
    %37 = arith.sitofp %36 : vector<8x8xi32> to vector<8x8xf32>
    %c0_10 = arith.constant 0 : index
    %c0_11 = arith.constant 0 : index
    %c0_12 = arith.constant 0 : index
    %38 = vector.load %arg4[%c0_10, %c0_11, %c0_12] : memref<1x1x1xf32, #tpu.memory_space<vmem>>, vector<1x1x1xf32>
    %cst_13 = arith.constant dense<0.000000e+00> : vector<1xf32>
    %39 = vector.multi_reduction <add>, %26, %cst_13 [1] : vector<1x8xf32> to vector<1xf32>
    %40 = vector.shape_cast %39 : vector<1xf32> to vector<1x1xf32>
    %41 = vector.shape_cast %40 : vector<1x1xf32> to vector<1x1x1xf32>
    %42 = arith.addf %38, %41 : vector<1x1x1xf32>
    %c0_14 = arith.constant 0 : index
    %c0_15 = arith.constant 0 : index
    %c0_16 = arith.constant 0 : index
    %43 = vector.load %arg4[%c0_14, %c0_15, %c0_16] : memref<1x1x1xf32, #tpu.memory_space<vmem>>, vector<1x1x1xf32>
    tpu.vector_store %arg4[%c0_14, %c0_15, %c0_16], %42 {strides = array<i32>} : memref<1x1x1xf32, #tpu.memory_space<vmem>>, vector<1x1x1xf32>,
    %c0_17 = arith.constant 0 : index
    %c0_18 = arith.constant 0 : index
    %c0_19 = arith.constant 0 : index
    %44 = vector.load %arg5[%c0_17, %c0_18, %c0_19] : memref<1x8x1xf32, #tpu.memory_space<vmem>>, vector<1x8x1xf32>
    %cst_20 = arith.constant dense<0.000000e+00> : vector<8xf32>
    %45 = vector.multi_reduction <add>, %37, %cst_20 [1] : vector<8x8xf32> to vector<8xf32>
    %46 = vector.shape_cast %45 : vector<8xf32> to vector<8x1xf32>
    %47 = vector.shape_cast %46 : vector<8x1xf32> to vector<1x8x1xf32>
    %48 = arith.addf %44, %47 : vector<1x8x1xf32>
    %c0_21 = arith.constant 0 : index
    %c0_22 = arith.constant 0 : index
    %c0_23 = arith.constant 0 : index
    %49 = vector.load %arg5[%c0_21, %c0_22, %c0_23] : memref<1x8x1xf32, #tpu.memory_space<vmem>>, vector<1x8x1xf32>
    tpu.vector_store %arg5[%c0_21, %c0_22, %c0_23], %48 {strides = array<i32>} : memref<1x8x1xf32, #tpu.memory_space<vmem>>, vector<1x8x1xf32>,
    %c0_24 = arith.constant 0 : index
    %c0_25 = arith.constant 0 : index
    %c0_26 = arith.constant 0 : index
    %50 = vector.load %arg6[%c0_24, %c0_25, %c0_26] : memref<1x8x1xf32, #tpu.memory_space<vmem>>, vector<1x8x1xf32>
    %cst_27 = arith.constant dense<0.000000e+00> : vector<8xf32>
    %51 = vector.multi_reduction <add>, %4, %cst_27 [1] : vector<8x8xf32> to vector<8xf32>
    %52 = vector.shape_cast %51 : vector<8xf32> to vector<8x1xf32>
    %53 = vector.shape_cast %52 : vector<8x1xf32> to vector<1x8x1xf32>
    %54 = arith.addf %50, %53 : vector<1x8x1xf32>
    %c0_28 = arith.constant 0 : index
    %c0_29 = arith.constant 0 : index
    %c0_30 = arith.constant 0 : index
    %55 = vector.load %arg6[%c0_28, %c0_29, %c0_30] : memref<1x8x1xf32, #tpu.memory_space<vmem>>, vector<1x8x1xf32>
    tpu.vector_store %arg6[%c0_28, %c0_29, %c0_30], %54 {strides = array<i32>} : memref<1x8x1xf32, #tpu.memory_space<vmem>>, vector<1x8x1xf32>,
    return
  }
  func.func @transform_0(%arg0: i32, %arg1: i32) -> (i32, i32) {
    %c1_i32 = arith.constant 1 : i32
    %0 = arith.muli %arg0, %c1_i32 : i32
    %1 = arith.addi %0, %arg1 : i32
    %c0_i32 = arith.constant 0 : i32
    %2 = arith.minsi %1, %c0_i32 : i32
    %c0_i32_0 = arith.constant 0 : i32
    %c0_i32_1 = arith.constant 0 : i32
    return %c0_i32_0, %2 : i32, i32
  }
  func.func @transform_1(%arg0: i32, %arg1: i32) -> (i32, i32) {
    %c1_i32 = arith.constant 1 : i32
    %0 = arith.muli %arg0, %c1_i32 : i32
    %1 = arith.addi %0, %arg1 : i32
    %c0_i32 = arith.constant 0 : i32
    %2 = arith.minsi %1, %c0_i32 : i32
    %c0_i32_0 = arith.constant 0 : i32
    %c0_i32_1 = arith.constant 0 : i32
    return %c0_i32_0, %2 : i32, i32
  }
  func.func @transform_2(%arg0: i32, %arg1: i32) -> (i32, i32, i32) {
    %c0_i32 = arith.constant 0 : i32
    %c0_i32_0 = arith.constant 0 : i32
    %c0_i32_1 = arith.constant 0 : i32
    return %arg0, %c0_i32, %c0_i32_0 : i32, i32, i32
  }
  func.func @transform_3(%arg0: i32, %arg1: i32) -> (i32, i32, i32) {
    %c0_i32 = arith.constant 0 : i32
    %c0_i32_0 = arith.constant 0 : i32
    %c0_i32_1 = arith.constant 0 : i32
    return %arg0, %c0_i32, %c0_i32_0 : i32, i32, i32
  }
  func.func @transform_4(%arg0: i32, %arg1: i32) -> (i32, i32, i32) {
    %c0_i32 = arith.constant 0 : i32
    %c0_i32_0 = arith.constant 0 : i32
    %c0_i32_1 = arith.constant 0 : i32
    return %arg0, %c0_i32, %c0_i32_0 : i32, i32, i32
  }
}

</mosaic_0001>

<llo_original>
// kernel: tpu_custom_call.1
$region0: #{tpu_custom_call.1}
  #allocation0 [shape = 'u32[]', space=smem, size = 0x4, offset = 0x4, fixed_abs, tag = 'smem constant byte address 0x4 - core index']
  #allocation1 [shape = 'u32[144,128]{1,0:T(1,128)}', space=vmem, size = 0x12000, scoped, tag = 'internal scratch']
  %s0 = inlined_call_operand.hbm [shape: f32[8,8], index: 0, kind: input, shape index: {}]
  %s1 = inlined_call_operand.hbm [shape: f32[8,8], index: 1, kind: input, shape index: {}]
  %s2 = inlined_call_operand.hbm [shape: f32[1,1,1], index: 2, kind: output, shape index: {0}]
  %s3 = inlined_call_operand.vmem [shape: f32[1,8,1], index: 3, kind: output, shape index: {1}]
  %s4 = inlined_call_operand.vmem [shape: f32[1,8,1], index: 4, kind: output, shape index: {2}]
  %5 = xla_tuple %s2, %s3, %s4
  %s6 = sld [smem:[#allocation0]]
  $region46: #{tpu_custom_call.1} parent=0
    _
  %s8 = ssub.s32 1, %s6
  %s9 = scalar_select 0, %s8, %s6
  $region1: #{tpu_custom_call.1} parent=0
    #allocation2 [shape = 'u8[4096]{0}', space=vmem, size = 0x1000, scoped, tag = 'input window, operand 0, single buffered']
    #allocation3 [shape = 's32[1]{0}', space=sflag, size = 0x4, scoped, tag = 'scoped memory for tpu_custom_call.1']
    #allocation4 [shape = 's32[1]{0}', space=sflag, size = 0x4, scoped, tag = 'scoped memory for tpu_custom_call.1']
    #allocation5 [shape = 'u8[4096]{0}', space=vmem, size = 0x1000, scoped, tag = 'input window, operand 1, single buffered']
    #allocation6 [shape = 's32[1]{0}', space=sflag, size = 0x4, scoped, tag = 'scoped memory for tpu_custom_call.1']
    #allocation7 [shape = 'u8[512]{0}', space=vmem, size = 0x400, scoped, tag = 'output window, operand 0, single buffered']
    %10 = vsyncpa [#allocation3], 0
    %11 = vsyncpa [#allocation6], 0
    %12 = vsyncpa [#allocation4], 0
    // Predicated region
    $region2: #{tpu_custom_call.1} parent=1 // pred_check
      _
    $region3: #{tpu_custom_call.1} parent=1 // pred_check_branch
      %14 = sbr.rel (0) target = $region5
    $region4: #{tpu_custom_call.1} parent=1 // pred_region
      %s15 = sadd.s32 0, 0
      %p16 = scmp.lt.s32.totalorder %s15, 0
      %s17 = scalar_select %p16, %s15, 0
      %s19 = ssub.s32 128, 128
      %20 = vsyncadd [#allocation3], %s19
      %s21 = smul.addr %s17, 128
      %s22 = scalar_lea.hbm %s0, %s21
      %s24 = sshll.u32 [#allocation2], 4
      %s25 = int_to_ptr.vmem [resolvable:$true] %s24
      %27 = dma.hbm_to_vmem [thread:$0]  %s22, 128, %s25, [#allocation3]
    $region5: #{tpu_custom_call.1} parent=1 // pred_fallthru
      _
    // Predicated region
    $region6: #{tpu_custom_call.1} parent=1 // pred_check
      _
    $region7: #{tpu_custom_call.1} parent=1 // pred_check_branch
      %29 = sbr.rel (0) target = $region9
    $region8: #{tpu_custom_call.1} parent=1 // pred_region
      %s30 = sadd.s32 0, 0
      %p31 = scmp.lt.s32.totalorder %s30, 0
      %s32 = scalar_select %p31, %s30, 0
      %s34 = ssub.s32 128, 128
      %35 = vsyncadd [#allocation6], %s34
      %s36 = smul.addr %s32, 128
      %s37 = scalar_lea.hbm %s1, %s36
      %s39 = sshll.u32 [#allocation5], 4
      %s40 = int_to_ptr.vmem [resolvable:$true] %s39
      %42 = dma.hbm_to_vmem [thread:$0]  %s37, 128, %s40, [#allocation6]
    $region9: #{tpu_custom_call.1} parent=1 // pred_fallthru
      _
    // Predicated region
    $region10: #{tpu_custom_call.1} parent=1 // pred_check
      _
    $region11: #{tpu_custom_call.1} parent=1 // pred_check_branch
      %44 = sbr.rel (0) target = $region13
    $region12: #{tpu_custom_call.1} parent=1 // pred_region
      %45 = dma.done [#allocation3], 128
    $region13: #{tpu_custom_call.1} parent=1 // pred_fallthru
      _
    // Predicated region
    $region14: #{tpu_custom_call.1} parent=1 // pred_check
      _
    $region15: #{tpu_custom_call.1} parent=1 // pred_check_branch
      %47 = sbr.rel (0) target = $region17
    $region16: #{tpu_custom_call.1} parent=1 // pred_region
      %48 = dma.done [#allocation6], 128
    $region17: #{tpu_custom_call.1} parent=1 // pred_fallthru
      _
    %s49 = sadd.s32 0, 0
    %p50 = scmp.lt.s32.totalorder %s49, 0
    %s51 = scalar_select %p50, %s49, 0
    %s52 = sadd.s32 0, 0
    %p53 = scmp.lt.s32.totalorder %s52, 0
    %s54 = scalar_select %p53, %s52, 0
    %p55 = scmp.eq.s32.totalorder 0, 0
    // Predicated region
    $region18: #{tpu_custom_call.1} parent=1 // pred_check
      %p56 = pneg %p55
    $region19: #{tpu_custom_call.1} parent=1 // pred_check_branch
      %58 = sbr.rel (%p56) target = $region21
    $region20: #{tpu_custom_call.1} parent=1 // pred_region
      %vm59 = vcmask 0
      %60 = vst.msk [vmem:[#allocation7] sm:$0x1] %vm59, 0.0
      %vm61 = vcmask 7168
      %62 = vst.msk [vmem:[%s3] sm:$0xff] %vm61, 0.0
      %63 = vst.msk [vmem:[%s4] sm:$0xff] %vm61, 0.0
    $region21: #{tpu_custom_call.1} parent=1 // pred_fallthru
      _
    %v64 = vld [vmem:[#allocation2] sm:$0xff]
    %v65 = vld [vmem:[#allocation5] sm:$0xff]
    %vm66 = vcmask 64512
    %v67 = vsel %vm66, %v64, -inf
    %v68 = vrot.slane %v67, 4
    %v69 = vmax.f32 %v67, %v68
    %v70 = vrot.slane %v69, 2
    %v71 = vmax.f32 %v69, %v70
    %v72 = vrot.slane %v71, 1
    %v73 = vmax.f32 %v71, %v72
    %v74 = vsub.f32 %v64, %v73
    %v75 = vmul.f32 %v74, 1.442695
    %v76 = vpow.pop %v75
    %v77 = vsel %vm66, %v76, 0.0
    %v78 = vrot.slane %v77, 4
    %v79 = vadd.f32 %v77, %v78
    %v80 = vrot.slane %v79, 2
    %v81 = vadd.f32 %v79, %v80
    %v82 = vrot.slane %v81, 1
    %v83 = vadd.f32 %v81, %v82
    %v84 = vlog2.pop %v83
    %v85 = vmul.f32 %v84, 0.6931472
    %v86 = vsel %vm66, %v65, 0.0
    %v87 = vrot.slane %v86, 4
    %v88 = vadd.f32 %v86, %v87
    %v89 = vrot.slane %v88, 2
    %v90 = vadd.f32 %v88, %v89
    %v91 = vrot.slane %v90, 1
    %v92 = vadd.f32 %v90, %v91
    %v93 = vand.u32 2147483647, %v65
    %v94 = vsel %vm66, %v93, 0.0
    %v95 = vrot.slane %v94, 4
    %v96 = vadd.f32 %v94, %v95
    %v97 = vrot.slane %v96, 2
    %v98 = vadd.f32 %v96, %v97
    %v99 = vrot.slane %v98, 1
    %v100 = vadd.f32 %v98, %v99
    %v101 = vmax.f32 %v100, 1e-12
    %v102 = vrcp.pop %v101
    %v103 = vmul.f32 %v85, %v92
    %v104 = vmul.f32 %v65, %v74
    %v105 = vsel %vm66, %v104, 0.0
    %v106 = vrot.slane %v105, 4
    %v107 = vadd.f32 %v105, %v106
    %v108 = vrot.slane %v107, 2
    %v109 = vadd.f32 %v107, %v108
    %v110 = vrot.slane %v109, 1
    %v111 = vadd.f32 %v109, %v110
    %v112 = vsub.f32 %v103, %v111
    %v113 = vmul.f32 %v112, %v102
    %v114 = vlaneseq
    %v115 = vshrl.u32 %v114, 7
    %vm116 = vcmp.eq.f32.partialorder %v64, %v73
    %v117 = vsel %vm116, %v115, 8
    %v118 = vsel %vm66, %v117, 2147483647
    %v119 = vrot.slane %v118, 4
    %vm120 = vcmp.lt.s32.totalorder %v118, %v119
    %v121 = vsel %vm120, %v118, %v119
    %v122 = vrot.slane %v121, 2
    %vm123 = vcmp.lt.s32.totalorder %v121, %v122
    %v124 = vsel %vm123, %v121, %v122
    %v125 = vrot.slane %v124, 1
    %vm126 = vcmp.lt.s32.totalorder %v124, %v125
    %v127 = vsel %vm126, %v124, %v125
    %vm128 = vcmp.eq.s32.totalorder %v115, %v127
    %v129 = vsel %vm128, 1, 0
    %v130 = vcvt.s32.f32 %v129
    %v131 = vld [vmem:[#allocation7] sm:$0x1]
    %v132 = vsel %vm66, %v113, 0.0
    %133 = vadd.xlane.f32.xlu0 %v132
    %v134 = vpop.xlane.xlu0 %133
    %v135 = vadd.f32 %v131, %v134
    %vm136 = vcmask 0
    %137 = vst.msk [vmem:[#allocation7] sm:$0x1] %vm136, %v135
    %v138 = vld [vmem:[%s3] sm:$0xff]
    %v139 = vsel %vm66, %v130, 0.0
    %140 = vadd.xlane.f32.xlu0 %v139
    %v141 = vpop.xlane.xlu0 %140
    %v142 = vadd.f32 %v138, %v141
    %vm143 = vcmask 7168
    %144 = vst.msk [vmem:[%s3] sm:$0xff] %vm143, %v142
    %v145 = vld [vmem:[%s4] sm:$0xff]
    %146 = vadd.xlane.f32.xlu0 %v86
    %v147 = vpop.xlane.xlu0 %146
    %v148 = vadd.f32 %v145, %v147
    %149 = vst.msk [vmem:[%s4] sm:$0xff] %vm143, %v148
    // Predicated region
    $region22: #{tpu_custom_call.1} parent=1 // pred_check
      _
    $region23: #{tpu_custom_call.1} parent=1 // pred_check_branch
      %151 = sbr.rel (0) target = $region25
    $region24: #{tpu_custom_call.1} parent=1 // pred_region
      %s153 = ssub.s32 16, 16
      %154 = vsyncadd [#allocation4], %s153
      %s156 = sshll.u32 [#allocation7], 4
      %s157 = int_to_ptr.vmem [resolvable:$true] %s156
      %159 = dma.vmem_to_hbm [thread:$0]  %s157, 16, %s2, [#allocation4]
    $region25: #{tpu_custom_call.1} parent=1 // pred_fallthru
      _
    // Predicated region
    $region26: #{tpu_custom_call.1} parent=1 // pred_check
      _
    $region27: #{tpu_custom_call.1} parent=1 // pred_check_branch
      %161 = sbr.rel (0) target = $region29
    $region28: #{tpu_custom_call.1} parent=1 // pred_region
      _
    $region29: #{tpu_custom_call.1} parent=1 // pred_fallthru
      _
    // Predicated region
    $region30: #{tpu_custom_call.1} parent=1 // pred_check
      _
    $region31: #{tpu_custom_call.1} parent=1 // pred_check_branch
      %163 = sbr.rel (0) target = $region33
    $region32: #{tpu_custom_call.1} parent=1 // pred_region
      _
    $region33: #{tpu_custom_call.1} parent=1 // pred_fallthru
      _
    // Predicated region
    $region34: #{tpu_custom_call.1} parent=1 // pred_check
      _
    $region35: #{tpu_custom_call.1} parent=1 // pred_check_branch
      %165 = sbr.rel (0) target = $region37
    $region36: #{tpu_custom_call.1} parent=1 // pred_region
      %166 = dma.done [#allocation4], 16
    $region37: #{tpu_custom_call.1} parent=1 // pred_fallthru
      _
    // Predicated region
    $region38: #{tpu_custom_call.1} parent=1 // pred_check
      _
    $region39: #{tpu_custom_call.1} parent=1 // pred_check_branch
      %168 = sbr.rel (0) target = $region41
    $region40: #{tpu_custom_call.1} parent=1 // pred_region
      _
    $region41: #{tpu_custom_call.1} parent=1 // pred_fallthru
      _
    // Predicated region
    $region42: #{tpu_custom_call.1} parent=1 // pred_check
      _
    $region43: #{tpu_custom_call.1} parent=1 // pred_check_branch
      %170 = sbr.rel (0) target = $region45
    $region44: #{tpu_custom_call.1} parent=1 // pred_region
      _
    $region45: #{tpu_custom_call.1} parent=1 // pred_fallthru
      _
    %171 = vsyncpa [#allocation3], 1
    %172 = vsyncpa [#allocation6], 1
    %173 = vsyncpa [#allocation4], 1

</llo_original>
